<compile_context>
chip_gen: v6e
topology: v6e:2x2x1
jax: 0.10.0
libtpu: 0.0.40
codegen_flags: <defaults>
</compile_context>

<pallas_src>
import functools

import jax
import jax.numpy as jnp
from jax.experimental import pallas as pl
from jax.experimental.pallas import tpu as pltpu


def _channel_attention_kernel(x_ref, w1t_ref, w2_ref, o_ref,
                              sum_acc, max_acc, *, hw, t_hw, needs_mask):
    # x_ref block: (1, C, T_HW); w1t: (C, Ch); w2: (C, Ch); o_ref block: (1, C, 1)
    k = pl.program_id(1)

    @pl.when(k == 0)
    def _init():
        sum_acc[...] = jnp.zeros_like(sum_acc)
        max_acc[...] = jnp.full_like(max_acc, -jnp.inf)

    x = x_ref[0].astype(jnp.float32)                       # (C, T_HW), f32 accumulation
    if needs_mask:
        lane = jax.lax.broadcasted_iota(jnp.int32, x.shape, 1)
        valid = (k * t_hw + lane) < hw
        x_sum = jnp.where(valid, x, 0.0)
        x_max = jnp.where(valid, x, -jnp.inf)
    else:
        x_sum = x
        x_max = x

    sum_acc[...] += jnp.sum(x_sum, axis=-1, keepdims=True)            # (C, 1)
    max_acc[...] = jnp.maximum(max_acc[...],
                               jnp.max(x_max, axis=-1, keepdims=True))

    @pl.when(k == pl.num_programs(1) - 1)
    def _finalize():
        w1t = w1t_ref[...].astype(jnp.float32)             # (C, Ch) = fc1 weight, transposed
        w2 = w2_ref[...].astype(jnp.float32)               # (C, Ch) = fc2 weight

        def mlp(p):                                        # p: (C, 1)
            # fc1: h[j] = sum_c w1[j, c] * p[c]  -> (1, Ch)   (VPU mul + sublane reduce)
            h = jnp.maximum(jnp.sum(w1t * p, axis=0, keepdims=True), 0.0)
            # fc2: out[c] = sum_j w2[c, j] * h[j] -> (C, 1)   (VPU mul + lane reduce)
            return jnp.sum(w2 * h, axis=1, keepdims=True)

        avg = sum_acc[...] * jnp.float32(1.0 / hw)         # true-HW mean
        att = jax.nn.sigmoid(mlp(avg) + mlp(max_acc[...])) # (C, 1)
        o_ref[0] = att.astype(o_ref.dtype)


def _pick_tile_hw(hw, c, itemsize):
    """Spatial tile width (lanes): multiple of 128, sized for VMEM on all gens."""
    lane = 128
    per_buffer_budget = 4 * 1024 * 1024          # ~4 MiB/buffer -> 8 MiB double-buffered
    max_lanes = (per_buffer_budget // max(c * itemsize, 1)) // lane * lane
    t_hw = max(lane, min(4096, max_lanes))
    if hw <= t_hw:
        return hw                                # single tile == full dim (no padding)
    return t_hw


def channel_attention(x, w1, w2, *, t_hw=None):
    """x: (B, C, H, W); w1: (C//ratio, C); w2: (C, C//ratio). Returns (B, C, 1, 1)."""
    B, C, H, W = x.shape
    hidden = w1.shape[0]
    hw = H * W
    x3 = x.reshape(B, C, hw)                     # stream native dtype (no f32 up-cast pass)

    if t_hw is None:
        t_hw = _pick_tile_hw(hw, C, jnp.dtype(x.dtype).itemsize)
    t_hw = min(t_hw, hw)
    num_k = pl.cdiv(hw, t_hw)
    needs_mask = (hw % t_hw) != 0

    kernel = functools.partial(_channel_attention_kernel,
                               hw=hw, t_hw=t_hw, needs_mask=needs_mask)

    out = pl.pallas_call(
        kernel,
        out_shape=jax.ShapeDtypeStruct((B, C, 1), x.dtype),
        grid_spec=pltpu.PrefetchScalarGridSpec(
            num_scalar_prefetch=0,
            grid=(B, num_k),
            in_specs=[
                pl.BlockSpec((1, C, t_hw), lambda b, k: (b, 0, k)),
                pl.BlockSpec((C, hidden), lambda b, k: (0, 0)),   # resident across HW tiles
                pl.BlockSpec((C, hidden), lambda b, k: (0, 0)),   # resident across HW tiles
            ],
            out_specs=pl.BlockSpec((1, C, 1), lambda b, k: (b, 0, 0)),
            scratch_shapes=[
                pltpu.VMEM((C, 1), jnp.float32),   # running sum
                pltpu.VMEM((C, 1), jnp.float32),   # running max
            ],
        ),
        compiler_params=pltpu.CompilerParams(
            dimension_semantics=("parallel", "arbitrary"),
        ),
    )(x3, jnp.transpose(w1), w2)
    return out.reshape(B, C, 1, 1)


def channel_attention_ref(x, w1, w2):
    """Plain-JAX reference mirroring the PyTorch forward."""
    avg = jnp.mean(x, axis=(2, 3))                          # (B, C)
    mx = jnp.max(x, axis=(2, 3))                            # (B, C)

    def mlp(p):
        h = jnp.maximum(p @ w1.T, 0.0)                      # (B, Ch)
        return h @ w2.T                                     # (B, C)

    out = jax.nn.sigmoid(mlp(avg) + mlp(mx))
    return out[:, :, None, None]


if __name__ == "__main__":
    B, C, H, W = 2, 16, 16, 16     # in_planes=16, ratio=8 -> hidden=2
    ratio = 8
    hidden = C // ratio

    key = jax.random.PRNGKey(0)
    kx, k1, k2 = jax.random.split(key, 3)
    x = jax.random.normal(kx, (B, C, H, W), dtype=jnp.float32)
    # Deterministic synthetic 1x1-conv weights (no bias).
    w1 = jax.random.normal(k1, (hidden, C), dtype=jnp.float32) * 0.2
    w2 = jax.random.normal(k2, (C, hidden), dtype=jnp.float32) * 0.2

    ref = channel_attention_ref(x, w1, w2)

    # Default tiling (HW=256 fits a single tile).
    out = jax.block_until_ready(channel_attention(x, w1, w2))
    assert out.shape == (B, C, 1, 1)
    assert jnp.allclose(out, ref, atol=1e-5, rtol=1e-5), "mismatch vs reference"

    # Exercise the multi-tile streaming path (2 tiles of 128 lanes, no padding).
    out_tiled = jax.block_until_ready(channel_attention(x, w1, w2, t_hw=128))
    assert jnp.allclose(out_tiled, ref, atol=1e-5, rtol=1e-5), "tiled mismatch"

    # Exercise the masked partial-last-tile path (HW=400 = 3*128 + 16).
    x2 = jax.random.normal(kx, (B, C, 20, 20), dtype=jnp.float32)
    ref2 = channel_attention_ref(x2, w1, w2)
    out2 = jax.block_until_ready(channel_attention(x2, w1, w2, t_hw=128))
    assert jnp.allclose(out2, ref2, atol=1e-5, rtol=1e-5), "masked-tile mismatch"

    print("KERNEL_OK")
</pallas_src>

<mosaic_0001>
module attributes {stable_mosaic.version = 11 : i64} {
  func.func @_channel_attention_kernel(%arg0: i32, %arg1: i32, %arg2: memref<1x16x256xf32, #tpu.memory_space<vmem>>, %arg3: memref<16x2xf32, #tpu.memory_space<vmem>>, %arg4: memref<16x2xf32, #tpu.memory_space<vmem>>, %arg5: memref<1x16x1xf32, #tpu.memory_space<vmem>>, %arg6: memref<16x1xf32, #tpu.memory_space<vmem>>, %arg7: memref<16x1xf32, #tpu.memory_space<vmem>>) attributes {dimension_semantics = [#tpu.dimension_semantics<parallel>, #tpu.dimension_semantics<arbitrary>], iteration_bounds = array<i64: 2, 1>, scalar_prefetch = 0 : i64, scratch_operands = 2 : i64, tpu.core_type = #tpu.core_type<tc>, window_params = [{transform_indices = @transform_0, window_bounds = array<i64: 1, 16, 256>}, {pipeline_mode = #tpu.pipeline_mode<synchronous>, transform_indices = @transform_1, window_bounds = array<i64: 16, 2>}, {pipeline_mode = #tpu.pipeline_mode<synchronous>, transform_indices = @transform_2, window_bounds = array<i64: 16, 2>}, {transform_indices = @transform_3, window_bounds = array<i64: 1, 16, 1>}]} {
    %c0_i32 = arith.constant 0 : i32
    %0 = arith.cmpi eq, %arg1, %c0_i32 : i32
    %1 = arith.extui %0 : i1 to i32
    %c0_i32_0 = arith.constant 0 : i32
    %2 = arith.cmpi ne, %1, %c0_i32_0 : i32
    scf.if %2 {
      %cst_14 = arith.constant 0.000000e+00 : f32
      %18 = vector.broadcast %cst_14 : f32 to vector<16x1xf32>
      %c0_15 = arith.constant 0 : index
      %c0_16 = arith.constant 0 : index
      %19 = vector.load %arg6[%c0_15, %c0_16] : memref<16x1xf32, #tpu.memory_space<vmem>>, vector<16x1xf32>
      tpu.vector_store %arg6[%c0_15, %c0_16], %18 {strides = array<i32>} : memref<16x1xf32, #tpu.memory_space<vmem>>, vector<16x1xf32>,
      %cst_17 = arith.constant 0xFF800000 : f32
      %20 = vector.broadcast %cst_17 : f32 to vector<16x1xf32>
      %c0_18 = arith.constant 0 : index
      %c0_19 = arith.constant 0 : index
      %21 = vector.load %arg7[%c0_18, %c0_19] : memref<16x1xf32, #tpu.memory_space<vmem>>, vector<16x1xf32>
      tpu.vector_store %arg7[%c0_18, %c0_19], %20 {strides = array<i32>} : memref<16x1xf32, #tpu.memory_space<vmem>>, vector<16x1xf32>,
    } else {
    }
    %c0 = arith.constant 0 : index
    %c0_1 = arith.constant 0 : index
    %c0_2 = arith.constant 0 : index
    %3 = vector.load %arg2[%c0, %c0_1, %c0_2] : memref<1x16x256xf32, #tpu.memory_space<vmem>>, vector<1x16x256xf32>
    %4 = vector.shape_cast %3 : vector<1x16x256xf32> to vector<16x256xf32>
    %c0_3 = arith.constant 0 : index
    %c0_4 = arith.constant 0 : index
    %5 = vector.load %arg6[%c0_3, %c0_4] : memref<16x1xf32, #tpu.memory_space<vmem>>, vector<16x1xf32>
    %cst = arith.constant dense<0.000000e+00> : vector<16xf32>
    %6 = vector.multi_reduction <add>, %4, %cst [1] : vector<16x256xf32> to vector<16xf32>
    %7 = vector.shape_cast %6 : vector<16xf32> to vector<16x1xf32>
    %8 = arith.addf %5, %7 : vector<16x1xf32>
    %c0_5 = arith.constant 0 : index
    %c0_6 = arith.constant 0 : index
    %9 = vector.load %arg6[%c0_5, %c0_6] : memref<16x1xf32, #tpu.memory_space<vmem>>, vector<16x1xf32>
    tpu.vector_store %arg6[%c0_5, %c0_6], %8 {strides = array<i32>} : memref<16x1xf32, #tpu.memory_space<vmem>>, vector<16x1xf32>,
    %c0_7 = arith.constant 0 : index
    %c0_8 = arith.constant 0 : index
    %10 = vector.load %arg7[%c0_7, %c0_8] : memref<16x1xf32, #tpu.memory_space<vmem>>, vector<16x1xf32>
    %cst_9 = arith.constant dense<0xFF800000> : vector<16xf32>
    %11 = vector.multi_reduction <maximumf>, %4, %cst_9 [1] : vector<16x256xf32> to vector<16xf32>
    %12 = vector.shape_cast %11 : vector<16xf32> to vector<16x1xf32>
    %13 = arith.maximumf %10, %12 : vector<16x1xf32>
    %c0_10 = arith.constant 0 : index
    %c0_11 = arith.constant 0 : index
    %14 = vector.load %arg7[%c0_10, %c0_11] : memref<16x1xf32, #tpu.memory_space<vmem>>, vector<16x1xf32>
    tpu.vector_store %arg7[%c0_10, %c0_11], %13 {strides = array<i32>} : memref<16x1xf32, #tpu.memory_space<vmem>>, vector<16x1xf32>,
    %c0_i32_12 = arith.constant 0 : i32
    %15 = arith.cmpi eq, %arg1, %c0_i32_12 : i32
    %16 = arith.extui %15 : i1 to i32
    %c0_i32_13 = arith.constant 0 : i32
    %17 = arith.cmpi ne, %16, %c0_i32_13 : i32
    scf.if %17 {
      %c0_14 = arith.constant 0 : index
      %c0_15 = arith.constant 0 : index
      %18 = vector.load %arg3[%c0_14, %c0_15] : memref<16x2xf32, #tpu.memory_space<vmem>>, vector<16x2xf32>
      %c0_16 = arith.constant 0 : index
      %c0_17 = arith.constant 0 : index
      %19 = vector.load %arg4[%c0_16, %c0_17] : memref<16x2xf32, #tpu.memory_space<vmem>>, vector<16x2xf32>
      %c0_18 = arith.constant 0 : index
      %c0_19 = arith.constant 0 : index
      %20 = vector.load %arg6[%c0_18, %c0_19] : memref<16x1xf32, #tpu.memory_space<vmem>>, vector<16x1xf32>
      %cst_20 = arith.constant 3.906250e-03 : f32
      %21 = vector.broadcast %cst_20 : f32 to vector<16x1xf32>
      %22 = arith.mulf %20, %21 : vector<16x1xf32>
      %23 = vector.broadcast %22 : vector<16x1xf32> to vector<16x2xf32>
      %24 = arith.mulf %18, %23 : vector<16x2xf32>
      %cst_21 = arith.constant dense<0.000000e+00> : vector<2xf32>
      %25 = vector.multi_reduction <add>, %24, %cst_21 [0] : vector<16x2xf32> to vector<2xf32>
      %26 = vector.shape_cast %25 : vector<2xf32> to vector<1x2xf32>
      %cst_22 = arith.constant 0.000000e+00 : f32
      %27 = vector.broadcast %cst_22 : f32 to vector<1x2xf32>
      %28 = arith.maximumf %26, %27 : vector<1x2xf32>
      %29 = vector.broadcast %28 : vector<1x2xf32> to vector<16x2xf32>
      %30 = arith.mulf %19, %29 : vector<16x2xf32>
      %cst_23 = arith.constant dense<0.000000e+00> : vector<16xf32>
      %31 = vector.multi_reduction <add>, %30, %cst_23 [1] : vector<16x2xf32> to vector<16xf32>
      %32 = vector.shape_cast %31 : vector<16xf32> to vector<16x1xf32>
      %c0_24 = arith.constant 0 : index
      %c0_25 = arith.constant 0 : index
      %33 = vector.load %arg7[%c0_24, %c0_25] : memref<16x1xf32, #tpu.memory_space<vmem>>, vector<16x1xf32>
      %34 = vector.broadcast %33 : vector<16x1xf32> to vector<16x2xf32>
      %35 = arith.mulf %18, %34 : vector<16x2xf32>
      %cst_26 = arith.constant dense<0.000000e+00> : vector<2xf32>
      %36 = vector.multi_reduction <add>, %35, %cst_26 [0] : vector<16x2xf32> to vector<2xf32>
      %37 = vector.shape_cast %36 : vector<2xf32> to vector<1x2xf32>
      %cst_27 = arith.constant 0.000000e+00 : f32
      %38 = vector.broadcast %cst_27 : f32 to vector<1x2xf32>
      %39 = arith.maximumf %37, %38 : vector<1x2xf32>
      %40 = vector.broadcast %39 : vector<1x2xf32> to vector<16x2xf32>
      %41 = arith.mulf %19, %40 : vector<16x2xf32>
      %cst_28 = arith.constant dense<0.000000e+00> : vector<16xf32>
      %42 = vector.multi_reduction <add>, %41, %cst_28 [1] : vector<16x2xf32> to vector<16xf32>
      %43 = vector.shape_cast %42 : vector<16xf32> to vector<16x1xf32>
      %44 = arith.addf %32, %43 : vector<16x1xf32>
      %45 = arith.negf %44 : vector<16x1xf32>
      %46 = math.exp %45 : vector<16x1xf32>
      %cst_29 = arith.constant 1.000000e+00 : f32
      %47 = vector.broadcast %cst_29 : f32 to vector<16x1xf32>
      %48 = arith.addf %47, %46 : vector<16x1xf32>
      %49 = arith.divf %47, %48 : vector<16x1xf32>
      %c0_30 = arith.constant 0 : index
      %c0_31 = arith.constant 0 : index
      %c0_32 = arith.constant 0 : index
      %50 = vector.load %arg5[%c0_30, %c0_31, %c0_32] : memref<1x16x1xf32, #tpu.memory_space<vmem>>, vector<1x16x1xf32>
      %51 = vector.shape_cast %50 : vector<1x16x1xf32> to vector<16x1xf32>
      %52 = vector.shape_cast %49 : vector<16x1xf32> to vector<1x16x1xf32>
      tpu.vector_store %arg5[%c0_30, %c0_31, %c0_32], %52 {strides = array<i32>} : memref<1x16x1xf32, #tpu.memory_space<vmem>>, vector<1x16x1xf32>,
    } else {
    }
    return
  }
  func.func @transform_0(%arg0: i32, %arg1: i32) -> (i32, i32, i32) {
    %c0_i32 = arith.constant 0 : i32
    %c0_i32_0 = arith.constant 0 : i32
    return %arg0, %c0_i32, %arg1 : i32, i32, i32
  }
  func.func @transform_1(%arg0: i32, %arg1: i32) -> (i32, i32) {
    %c0_i32 = arith.constant 0 : i32
    %c0_i32_0 = arith.constant 0 : i32
    %c0_i32_1 = arith.constant 0 : i32
    return %c0_i32, %c0_i32_0 : i32, i32
  }
  func.func @transform_2(%arg0: i32, %arg1: i32) -> (i32, i32) {
    %c0_i32 = arith.constant 0 : i32
    %c0_i32_0 = arith.constant 0 : i32
    %c0_i32_1 = arith.constant 0 : i32
    return %c0_i32, %c0_i32_0 : i32, i32
  }
  func.func @transform_3(%arg0: i32, %arg1: i32) -> (i32, i32, i32) {
    %c0_i32 = arith.constant 0 : i32
    %c0_i32_0 = arith.constant 0 : i32
    %c0_i32_1 = arith.constant 0 : i32
    return %arg0, %c0_i32, %c0_i32_0 : i32, i32, i32
  }
}

</mosaic_0001>

<llo_original>
// kernel: tpu_custom_call.1
$region0: #{tpu_custom_call.1}
  #allocation0 [shape = 'u32[]', space=smem, size = 0x4, offset = 0x4, fixed_abs, tag = 'smem constant byte address 0x4 - core index']
  #allocation1 [shape = 'u32[144,128]{1,0:T(1,128)}', space=vmem, size = 0x12000, scoped, tag = 'internal scratch']
  #allocation2 [shape = 'f32[16,1]{1,0:T(8,128)}', space=vmem, size = 0x2000, scoped, tag = 'scratch operand']
  #allocation3 [shape = 'f32[16,1]{1,0:T(8,128)}', space=vmem, size = 0x2000, scoped, tag = 'scratch operand']
  %s0 = inlined_call_operand.hbm [shape: f32[2,16,256], index: 0, kind: input, shape index: {}]
  %s1 = inlined_call_operand.vmem [shape: f32[16,2], index: 1, kind: input, shape index: {}]
  %s2 = inlined_call_operand.vmem [shape: f32[16,2], index: 2, kind: input, shape index: {}]
  %s3 = inlined_call_operand.vmem [shape: f32[2,16,1], index: 3, kind: output, shape index: {}]
  %s4 = sld [smem:[#allocation0]]
  $region57: #{tpu_custom_call.1} parent=0
    _
  %s6 = ssub.s32 1, %s4
  %s7 = scalar_select 0, %s6, %s4
  $region1: #{tpu_custom_call.1} parent=0
    #allocation4 [shape = 'u8[32768]{0}', space=vmem, size = 0x8000, scoped, tag = 'input window, operand 0']
    #allocation5 [shape = 's32[2]{0}', space=sflag, size = 0x8, scoped, tag = 'scoped memory for tpu_custom_call.1']
    %8 = vsyncpa [#allocation5], 0
    %s9 = scalar_lea.sflag [#allocation5], 1
    %10 = vsyncpa %s9, 0
    loop: start=0, step=1, limit=4
    $region2: #{tpu_custom_call.1} parent=1 // loop_pre_header
      _
    $region3: #{tpu_custom_call.1} parent=1 // loop_header
      %s12 = sphi 0, %s16
      %p13 = scmp.ge.s32.totalorder %s12, 4
      %s19 = sphi 0, %s31
      %s20 = sphi 0, %s27
      %s21 = sphi 0, %s19
      %s22 = sphi 0, %s20
      %s23 = sphi 0, %s21
      %s24 = sphi 0, %s22
      %s36 = sphi 0, %s38
      %s39 = sphi 0, %s36
      %s40 = sphi 0, %s39
      %s56 = sphi 0, %s40
      %s60 = sphi 0, %s60
      %s62 = sphi 0, %s60
      %s63 = sphi 0, %s62
      %s77 = sphi 0, %s63
      %s81 = sphi 0, %s81
      %s83 = sphi 0, %s81
      %s84 = sphi 0, %s83
      %s98 = sphi 0, %s84
      %s104 = sphi 0, %s106
      %s107 = sphi 0, %s104
      %s108 = sphi 0, %s107
      %s124 = sphi 0, %s108
    $region4: #{tpu_custom_call.1} parent=1 // loop_header_branch
      %15 = sbr.rel (%p13) target = $region8
    $region5: #{tpu_custom_call.1} parent=1 // loop_body
      %s17 = ssub.s32 %s12, 1
      %s18 = ssub.s32 %s12, 2
      %s25 = sadd.s32 1, %s20
      %p26 = scmp.ge.s32.totalorder %s25, 1
      %s27 = scalar_select %p26, 0, %s25
      %s28 = sadd.s32 1, %s19
      %s29 = scalar_select %p26, %s28, %s19
      %p30 = scmp.ge.s32.totalorder %s29, 2
      %s31 = scalar_select %p30, 0, %s29
      %s32 = ssub.s32 %s19, %s31
      %s33 = ssub.s32 %s20, %s27
      %s34 = sor.u32 %s32, %s33
      %p35 = scmp.eq.s32.totalorder %s34, 0
      %s37 = sadd.s32 %s36, 1
      %s38 = scalar_select %p35, %s36, %s37
      %p41 = pneg %p35
      %p42 = scmp.eq.s32.totalorder %s12, 1
      %p43 = por %p41, %p42
      %p44 = scmp.ne.s32.totalorder %s36, %s39
      %p45 = scmp.eq.s32.totalorder %s12, 0
      %p46 = por %p44, %p45
      %p47 = scmp.ne.s32.totalorder %s36, %s39
      %p48 = scmp.eq.s32.totalorder %s17, 1
      %p49 = por %p47, %p48
      %p50 = scmp.ne.s32.totalorder %s39, %s40
      %p51 = scmp.eq.s32.totalorder %s17, 0
      %p52 = por %p50, %p51
      %p53 = scmp.ne.s32.totalorder %s39, %s40
      %p54 = scmp.eq.s32.totalorder %s18, 1
      %p55 = por %p53, %p54
      %p57 = scmp.ne.s32.totalorder %s40, %s56
      %p58 = scmp.eq.s32.totalorder %s18, 0
      %p59 = por %p57, %p58
      %s61 = sadd.s32 %s60, 1
      %p64 = scmp.eq.s32.totalorder %s12, 1
      %p65 = scmp.ne.s32.totalorder %s60, %s62
      %p66 = scmp.eq.s32.totalorder %s12, 0
      %p67 = por %p65, %p66
      %p68 = scmp.ne.s32.totalorder %s60, %s62
      %p69 = scmp.eq.s32.totalorder %s17, 1
      %p70 = por %p68, %p69
      %p71 = scmp.ne.s32.totalorder %s62, %s63
      %p72 = scmp.eq.s32.totalorder %s17, 0
      %p73 = por %p71, %p72
      %p74 = scmp.ne.s32.totalorder %s62, %s63
      %p75 = scmp.eq.s32.totalorder %s18, 1
      %p76 = por %p74, %p75
      %p78 = scmp.ne.s32.totalorder %s63, %s77
      %p79 = scmp.eq.s32.totalorder %s18, 0
      %p80 = por %p78, %p79
      %s82 = sadd.s32 %s81, 1
      %p85 = scmp.eq.s32.totalorder %s12, 1
      %p86 = scmp.ne.s32.totalorder %s81, %s83
      %p87 = scmp.eq.s32.totalorder %s12, 0
      %p88 = por %p86, %p87
      %p89 = scmp.ne.s32.totalorder %s81, %s83
      %p90 = scmp.eq.s32.totalorder %s17, 1
      %p91 = por %p89, %p90
      %p92 = scmp.ne.s32.totalorder %s83, %s84
      %p93 = scmp.eq.s32.totalorder %s17, 0
      %p94 = por %p92, %p93
      %p95 = scmp.ne.s32.totalorder %s83, %s84
      %p96 = scmp.eq.s32.totalorder %s18, 1
      %p97 = por %p95, %p96
      %p99 = scmp.ne.s32.totalorder %s84, %s98
      %p100 = scmp.eq.s32.totalorder %s18, 0
      %p101 = por %p99, %p100
      %s102 = ssub.s32 %s19, %s31
      %p103 = scmp.eq.s32.totalorder %s102, 0
      %s105 = sadd.s32 %s104, 1
      %s106 = scalar_select %p103, %s104, %s105
      %p109 = pneg %p103
      %p110 = scmp.eq.s32.totalorder %s12, 1
      %p111 = por %p109, %p110
      %p112 = scmp.ne.s32.totalorder %s104, %s107
      %p113 = scmp.eq.s32.totalorder %s12, 0
      %p114 = por %p112, %p113
      %p115 = scmp.ne.s32.totalorder %s104, %s107
      %p116 = scmp.eq.s32.totalorder %s17, 1
      %p117 = por %p115, %p116
      %p118 = scmp.ne.s32.totalorder %s107, %s108
      %p119 = scmp.eq.s32.totalorder %s17, 0
      %p120 = por %p118, %p119
      %p121 = scmp.ne.s32.totalorder %s107, %s108
      %p122 = scmp.eq.s32.totalorder %s18, 1
      %p123 = por %p121, %p122
      %p125 = scmp.ne.s32.totalorder %s108, %s124
      %p126 = scmp.eq.s32.totalorder %s18, 0
      %p127 = por %p125, %p126
      %p128 = scmp.le.s32.totalorder 1, %s12
      %p129 = scmp.lt.s32.totalorder %s12, 3
      %p130 = pnand %p128, %p129
      %p131 = pneg %p130
      // Predicated region
      $region9: #{tpu_custom_call.1} parent=5 // pred_check
        _
      $region10: #{tpu_custom_call.1} parent=5 // pred_check_branch
        %133 = sbr.rel (%p130) target = $region12
      $region11: #{tpu_custom_call.1} parent=5 // pred_region
        %s134 = ssub.s32 %s12, 1
        // Predicated region
        $region13: #{tpu_custom_call.1} parent=11 // pred_check
          %p135 = pneg %p73
        $region14: #{tpu_custom_call.1} parent=11 // pred_check_branch
          %137 = sbr.rel (%p135) target = $region16
        $region15: #{tpu_custom_call.1} parent=11 // pred_region
          _
        $region16: #{tpu_custom_call.1} parent=11 // pred_fallthru
          _
        // Predicated region
        $region17: #{tpu_custom_call.1} parent=11 // pred_check
          %p138 = pneg %p94
        $region18: #{tpu_custom_call.1} parent=11 // pred_check_branch
          %140 = sbr.rel (%p138) target = $region20
        $region19: #{tpu_custom_call.1} parent=11 // pred_region
          _
        $region20: #{tpu_custom_call.1} parent=11 // pred_fallthru
          _
      $region12: #{tpu_custom_call.1} parent=5 // pred_fallthru
        _
      %p141 = scmp.lt.s32.totalorder %s12, 2
      // Predicated region
      $region21: #{tpu_custom_call.1} parent=5 // pred_check
        %p142 = pneg %p141
      $region22: #{tpu_custom_call.1} parent=5 // pred_check_branch
        %144 = sbr.rel (%p142) target = $region24
      $region23: #{tpu_custom_call.1} parent=5 // pred_region
        // Predicated region
        $region25: #{tpu_custom_call.1} parent=23 // pred_check
          %p145 = pneg %p46
        $region26: #{tpu_custom_call.1} parent=23 // pred_check_branch
          %147 = sbr.rel (%p145) target = $region28
        $region27: #{tpu_custom_call.1} parent=23 // pred_region
          %s148 = sand.u32 %s36, 1
          %s149 = scalar_lea.sflag [#allocation5], %s148
          %s150 = sand.u32 %s36, 1
          %s151 = smul.addr %s150, 32
          %s152 = scalar_lea.vmem [#allocation4], %s151
          %s153 = smul.u32 2, %s20
          %s155 = ssub.s32 512, 512
          %156 = vsyncadd %s149, %s155
          %s157 = smul.addr %s19, 4
          %s158 = sadd.s32 %s153, %s157
          %s159 = smul.addr %s158, 128
          %s160 = scalar_lea.hbm %s0, %s159
          %s161 = sshll.u32 %s152, 4
          %s162 = int_to_ptr.vmem [resolvable:$true] %s161
          %167 = dma.hbm_to_vmem [thread:$0]  %s160, 512, %s162, %s149, 256, 256, 16
        $region28: #{tpu_custom_call.1} parent=23 // pred_fallthru
          _
      $region24: #{tpu_custom_call.1} parent=5 // pred_fallthru
        _
      %p168 = scmp.le.s32.totalorder 1, %s12
      %p169 = scmp.lt.s32.totalorder %s12, 3
      %p170 = pnand %p168, %p169
      %p171 = pneg %p170
      // Predicated region
      $region29: #{tpu_custom_call.1} parent=5 // pred_check
        _
      $region30: #{tpu_custom_call.1} parent=5 // pred_check_branch
        %173 = sbr.rel (%p170) target = $region32
      $region31: #{tpu_custom_call.1} parent=5 // pred_region
        %s174 = ssub.s32 %s12, 1
        %s175 = sand.u32 %s39, 1
        %s176 = scalar_lea.sflag [#allocation5], %s175
        %s177 = sand.u32 %s39, 1
        %s178 = smul.addr %s177, 32
        %s179 = scalar_lea.vmem [#allocation4], %s178
        // Predicated region
        $region33: #{tpu_custom_call.1} parent=31 // pred_check
          %p180 = pneg %p52
        $region34: #{tpu_custom_call.1} parent=31 // pred_check_branch
          %182 = sbr.rel (%p180) target = $region36
        $region35: #{tpu_custom_call.1} parent=31 // pred_region
          %183 = dma.done %s176, 512
        $region36: #{tpu_custom_call.1} parent=31 // pred_fallthru
          _
        %s184 = sand.u32 %s39, 1
        %s185 = scalar_lea.sflag [#allocation5], %s184
        %s186 = sand.u32 %s39, 1
        %s187 = smul.addr %s186, 32
        %s188 = scalar_lea.vmem [#allocation4], %s187
        %p189 = pneg %p52
        %p190 = pneg %p49
        %p191 = pneg %p73
        %p192 = pneg %p70
        %p193 = pneg %p94
        %p194 = pneg %p91
        %p195 = pneg %p120
        %p196 = pneg %p117
        %p197 = scmp.lt.s32.totalorder %s21, 1
        %s198 = scalar_select %p197, %s21, 1
        %s199 = smul.addr %s198, 2
        %s200 = smul.addr %s199, 8
        %s201 = scalar_lea.vmem %s3, %s200
        %s202 = smul.u32 2, %s22
        %p203 = scmp.lt.s32.totalorder %s21, 1
        %s204 = scalar_select %p203, %s21, 1
        %s205 = smul.addr %s204, 2
        %s206 = smul.addr %s205, 8
        %s207 = scalar_lea.vmem %s3, %s206
        %p208 = scmp.eq.s32.totalorder %s22, 0
        // Predicated region
        $region37: #{tpu_custom_call.1} parent=31 // pred_check
          %p209 = pneg %p208
        $region38: #{tpu_custom_call.1} parent=31 // pred_check_branch
          %211 = sbr.rel (%p209) target = $region40
        $region39: #{tpu_custom_call.1} parent=31 // pred_region
          %vm212 = vcmask 7168
          %213 = vst.msk [vmem:[#allocation2] sm:$0xff] %vm212, 0.0
          %214 = vst.msk [vmem:[#allocation2 + $0x8] sm:$0xff] %vm212, 0.0
          %215 = vst.msk [vmem:[#allocation3] sm:$0xff] %vm212, -inf
          %216 = vst.msk [vmem:[#allocation3 + $0x8] sm:$0xff] %vm212, -inf
        $region40: #{tpu_custom_call.1} parent=31 // pred_fallthru
          _
        %v217 = vld [vmem:[%s179] sm:$0xff]
        %v218 = vld [vmem:[%s179 + $0x8] sm:$0xff]
        %v219 = vld [vmem:[%s179 + $0x10] sm:$0xff]
        %v220 = vld [vmem:[%s179 + $0x18] sm:$0xff]
        %v221 = vld [vmem:[#allocation2] sm:$0xff]
        %v222 = vld [vmem:[#allocation2 + $0x8] sm:$0xff]
        %v223 = vadd.f32 %v217, %v218
        %224 = vadd.xlane.f32.xlu0 %v223
        %v225 = vpop.xlane.xlu0 %224
        %v226 = vadd.f32 %v219, %v220
        %227 = vadd.xlane.f32.xlu0 %v226
        %v228 = vpop.xlane.xlu0 %227
        %v229 = vadd.f32 %v221, %v225
        %v230 = vadd.f32 %v222, %v228
        %vm231 = vcmask 7168
        %232 = vst.msk [vmem:[#allocation2] sm:$0xff] %vm231, %v229
        %233 = vst.msk [vmem:[#allocation2 + $0x8] sm:$0xff] %vm231, %v230
        %v234 = vld [vmem:[#allocation3] sm:$0xff]
        %v235 = vld [vmem:[#allocation3 + $0x8] sm:$0xff]
        %v236 = vmax.f32 %v217, %v218
        %237 = vmax.xlane.f32.xlu0 %v236
        %v238 = vpop.xlane.xlu0 %237
        %v239 = vmax.f32 %v219, %v220
        %240 = vmax.xlane.f32.xlu0 %v239
        %v241 = vpop.xlane.xlu0 %240
        %v242 = vmax.f32 %v234, %v238
        %v243 = vmax.f32 %v235, %v241
        %244 = vst.msk [vmem:[#allocation3] sm:$0xff] %vm231, %v242
        %245 = vst.msk [vmem:[#allocation3 + $0x8] sm:$0xff] %vm231, %v243
        // Predicated region
        $region41: #{tpu_custom_call.1} parent=31 // pred_check
          %p246 = pneg %p208
        $region42: #{tpu_custom_call.1} parent=31 // pred_check_branch
          %248 = sbr.rel (%p246) target = $region44
        $region43: #{tpu_custom_call.1} parent=31 // pred_region
          %v249 = vld [vmem:[%s1] sm:$0xff]
          %v250 = vld [vmem:[%s1 + $0x8] sm:$0xff]
          %v251 = vld [vmem:[%s2] sm:$0xff]
          %v252 = vld [vmem:[%s2 + $0x8] sm:$0xff]
          %v253 = vld [vmem:[#allocation2] sm:$0xff]
          %v254 = vld [vmem:[#allocation2 + $0x8] sm:$0xff]
          %v255 = vmul.f32 %v253, 0.00390625
          %v256 = vmul.f32 %v254, 0.00390625
          %258 = vset.pattern.permute.xlu0 0
          %259 = vperm.xlu0 %258, %v255
          %v260 = vpop.permute.xlu0 %259
          %263 = vset.pattern.permute.xlu0 0
          %264 = vperm.xlu0 %263, %v256
          %v265 = vpop.permute.xlu0 %264
          %v267 = vmul.f32 %v249, %v260
          %v268 = vmul.f32 %v250, %v265
          %vm269 = vcmask 15360
          %v270 = vsel %vm269, %v267, 0.0
          %v271 = vsel %vm269, %v268, 0.0
          %v272 = vadd.f32 %v270, %v271
          %v273 = vrot.slane %v272, 4
          %v274 = vadd.f32 %v272, %v273
          %v275 = vrot.slane %v274, 2
          %v276 = vadd.f32 %v274, %v275
          %v277 = vrot.slane %v276, 1
          %v278 = vadd.f32 %v276, %v277
          %v279 = vmax.f32 %v278, 0.0
          %v280 = vmul.f32 %v251, %v279
          %v281 = vmul.f32 %v252, %v279
          %v282 = vsel %vm269, %v280, 0.0
          %283 = vadd.xlane.f32.xlu0 %v282
          %v284 = vpop.xlane.xlu0 %283
          %v285 = vsel %vm269, %v281, 0.0
          %286 = vadd.xlane.f32.xlu0 %v285
          %v287 = vpop.xlane.xlu0 %286
          %v288 = vld [vmem:[#allocation3] sm:$0xff]
          %v289 = vld [vmem:[#allocation3 + $0x8] sm:$0xff]
          %291 = vset.pattern.permute.xlu0 0
          %292 = vperm.xlu0 %291, %v288
          %v293 = vpop.permute.xlu0 %292
          %296 = vset.pattern.permute.xlu0 0
          %297 = vperm.xlu0 %296, %v289
          %v298 = vpop.permute.xlu0 %297
          %v300 = vmul.f32 %v249, %v293
          %v301 = vmul.f32 %v250, %v298
          %v302 = vsel %vm269, %v300, 0.0
          %v303 = vsel %vm269, %v301, 0.0
          %v304 = vadd.f32 %v302, %v303
          %v305 = vrot.slane %v304, 4
          %v306 = vadd.f32 %v304, %v305
          %v307 = vrot.slane %v306, 2
          %v308 = vadd.f32 %v306, %v307
          %v309 = vrot.slane %v308, 1
          %v310 = vadd.f32 %v308, %v309
          %v311 = vmax.f32 %v310, 0.0
          %v312 = vmul.f32 %v251, %v311
          %v313 = vmul.f32 %v252, %v311
          %v314 = vsel %vm269, %v312, 0.0
          %315 = vadd.xlane.f32.xlu0 %v314
          %v316 = vpop.xlane.xlu0 %315
          %v317 = vsel %vm269, %v313, 0.0
          %318 = vadd.xlane.f32.xlu0 %v317
          %v319 = vpop.xlane.xlu0 %318
          %v320 = vadd.f32 %v284, %v316
          %v321 = vadd.f32 %v287, %v319
          %v322 = vxor.u32 %v320, 2147483648
          %v323 = vxor.u32 %v321, 2147483648
          %v324 = vmul.f32 %v322, 1.442695
          %v325 = vpow.pop %v324
          %v326 = vmul.f32 %v323, 1.442695
          %v327 = vpow.pop %v326
          %v328 = vadd.f32 %v325, 1.0
          %v329 = vadd.f32 %v327, 1.0
          %v330 = vrcp.pop %v328
          %v331 = vmul.f32 1.0, %v330
          %v332 = vrcp.pop %v329
          %v333 = vmul.f32 1.0, %v332
          %334 = vst.msk [vmem:[%s207] sm:$0xff] %vm231, %v331
          %335 = vst.msk [vmem:[%s207 + $0x8] sm:$0xff] %vm231, %v333
        $region44: #{tpu_custom_call.1} parent=31 // pred_fallthru
          _
        %p336 = scmp.lt.s32.totalorder %s21, 1
        %s337 = scalar_select %p336, %s21, 1
        %s338 = smul.addr %s337, 2
        %s339 = smul.addr %s338, 8
        %s340 = scalar_lea.vmem %s3, %s339
        // Predicated region
        $region45: #{tpu_custom_call.1} parent=31 // pred_check
          %p341 = pneg %p117
        $region46: #{tpu_custom_call.1} parent=31 // pred_check_branch
          %343 = sbr.rel (%p341) target = $region48
        $region47: #{tpu_custom_call.1} parent=31 // pred_region
          _
        $region48: #{tpu_custom_call.1} parent=31 // pred_fallthru
          _
      $region32: #{tpu_custom_call.1} parent=5 // pred_fallthru
        _
      %p344 = scmp.le.s32.totalorder 2, %s12
      // Predicated region
      $region49: #{tpu_custom_call.1} parent=5 // pred_check
        %p345 = pneg %p344
      $region50: #{tpu_custom_call.1} parent=5 // pred_check_branch
        %347 = sbr.rel (%p345) target = $region52
      $region51: #{tpu_custom_call.1} parent=5 // pred_region
        %s348 = ssub.s32 %s12, 2
        // Predicated region
        $region53: #{tpu_custom_call.1} parent=51 // pred_check
          %p349 = pneg %p123
        $region54: #{tpu_custom_call.1} parent=51 // pred_check_branch
          %351 = sbr.rel (%p349) target = $region56
        $region55: #{tpu_custom_call.1} parent=51 // pred_region
          %p352 = scmp.lt.s32.totalorder %s23, 1
          %s353 = scalar_select %p352, %s23, 1
          %s354 = smul.addr %s353, 2
          %s355 = smul.addr %s354, 8
          %s356 = scalar_lea.vmem %s3, %s355
        $region56: #{tpu_custom_call.1} parent=51 // pred_fallthru
          _
      $region52: #{tpu_custom_call.1} parent=5 // pred_fallthru
        _
    $region6: #{tpu_custom_call.1} parent=1 // loop_footer
      %s16 = sadd.s32 1, %s12
    $region7: #{tpu_custom_call.1} parent=1 // loop_footer_branch
      %11 = sbr.rel target = $region3
    $region8: #{tpu_custom_call.1} parent=1 // loop_exit
      _
    %357 = vsyncpa [#allocation5], 1
    %s358 = scalar_lea.sflag [#allocation5], 1
    %359 = vsyncpa %s358, 1

</llo_original>
